<compile_context>
chip_gen: v6e
topology: v6e:2x2x1
jax: 0.10.0
libtpu: 0.0.40
codegen_flags: <defaults>
</compile_context>

<pallas_src>
import jax
import jax.numpy as jnp
from jax.experimental import pallas as pl
from jax.experimental.pallas import tpu as pltpu

ALPHA = 0.2          # leaky-relu negative slope (module's `alpha`)
CONCAT = True        # module's `concat` flag (apply ELU at the end)
MASK_VAL = -9e15     # the -9000000000000000.0 "zero_vec" used by the module


def _round_up(x, m):
    return (x + m - 1) // m * m


# --------------------- kernel 1: projection + logit halves -----------------

def _proj_kernel(h_ref, w_ref, a12_ref, wh_ref, f12_ref):
    # h_ref:   (TR, F_in)        bf16
    # w_ref:   (F_in, F_out_pad) bf16   (columns >= F_out are zero)
    # a12_ref: (F_out_pad, 2)    f32    columns = [a1, a2], padded rows zero
    # wh_ref:  (TR, F_out_pad)   bf16   (out)
    # f12_ref: (TR, 2)           f32    (out) [:,0] = Wh@a1, [:,1] = Wh@a2
    wh = jnp.dot(h_ref[...], w_ref[...], preferred_element_type=jnp.float32)
    # tiny matmul, kept f32 for clean attention logits
    f12_ref[...] = jnp.dot(wh, a12_ref[...], preferred_element_type=jnp.float32)
    wh_ref[...] = wh.astype(wh_ref.dtype)


# ------------- kernel 2: masked attention, online softmax, aggregate -------

def _make_attn_kernel(n_real, n_pad, tk, alpha, mask_val, concat):
    need_col_mask = n_real < n_pad

    def attn_kernel(f1_ref, f2_ref, adj_ref, whk_ref, out_ref,
                    m_sc, l_sc, acc_sc):
        # f1_ref:  (1, TQ, 1)         f32   query-side logit half
        # f2_ref:  (1, 1, TK)         f32   key-side logit half (broadcast-ready)
        # adj_ref: (1, TQ, TK)        int8  adjacency tile
        # whk_ref: (1, TK, F_out_pad) bf16  key-block projected features
        # out_ref: (1, TQ, F_out_pad) f32   (written on the last key block)
        ki = pl.program_id(2)

        @pl.when(ki == 0)
        def _():
            m_sc[...] = jnp.full_like(m_sc, -jnp.inf)
            l_sc[...] = jnp.zeros_like(l_sc)
            acc_sc[...] = jnp.zeros_like(acc_sc)

        f1 = f1_ref[0]            # (TQ, 1)
        f2 = f2_ref[0]            # (1, TK)
        adj = adj_ref[0]          # (TQ, TK) int8
        wh_k = whk_ref[0]         # (TK, F_out_pad) bf16

        e = f1 + f2                                   # (TQ, TK)
        e = jnp.where(e > 0, e, alpha * e)            # leaky_relu (before mask)
        e = jnp.where(adj > 0, e, mask_val)           # adjacency mask
        if need_col_mask:
            # Exclude padded key columns exactly, so even a degenerate
            # all-masked row softmaxes over the true N keys like the reference.
            col = jax.lax.broadcasted_iota(jnp.int32, e.shape, 1) + ki * tk
            e = jnp.where(col < n_real, e, -jnp.inf)

        m_new = jnp.maximum(m_sc[...], jnp.max(e, axis=-1, keepdims=True))
        corr = jnp.exp(m_sc[...] - m_new)
        p = jnp.exp(e - m_new)
        l_sc[...] = corr * l_sc[...] + jnp.sum(p, axis=-1, keepdims=True)
        acc_sc[...] = corr * acc_sc[...] + jnp.dot(
            p.astype(wh_k.dtype), wh_k, preferred_element_type=jnp.float32)
        m_sc[...] = m_new

        @pl.when(ki == pl.num_programs(2) - 1)
        def _():
            hp = acc_sc[...] * pl.reciprocal(l_sc[...], approx=True)
            if concat:
                # ELU(alpha=1); exp only sees the non-positive branch
                hp = jnp.where(hp > 0, hp, jnp.exp(jnp.minimum(hp, 0.0)) - 1.0)
            out_ref[0] = hp.astype(out_ref.dtype)

    return attn_kernel


# ------------------------------- wrapper ------------------------------------

def gat_layer(h, adj, W, a):
    B, N, F_in = h.shape
    F_out = W.shape[1]
    F_out_pad = _round_up(F_out, 128)       # lane-dense Wh / output stores
    T = min(256, _round_up(N, 8))           # query/key node tile
    N_pad = _round_up(N, T)
    n_t = N_pad // T

    # ---- wrapper-side packing / padding (cheap, one-shot XLA ops) ----
    h_p = jnp.pad(h.astype(jnp.bfloat16), ((0, 0), (0, N_pad - N), (0, 0)))
    adj_i8 = jnp.pad((adj > 0).astype(jnp.int8),
                     ((0, 0), (0, N_pad - N), (0, N_pad - N)))
    W_p = jnp.zeros((F_in, F_out_pad), jnp.bfloat16).at[:, :F_out].set(
        W.astype(jnp.bfloat16))
    a12 = jnp.zeros((F_out_pad, 2), jnp.float32)
    a12 = a12.at[:F_out, 0].set(a[:F_out, 0]).at[:F_out, 1].set(a[F_out:, 0])

    # Fold batch into the row axis so tiny batches still amortize grid steps.
    h2 = h_p.reshape(B * N_pad, F_in)

    vmem_limit = 32 * 1024 * 1024  # explicit budget; tiles above stay << this

    # ---- kernel 1: Wh and fused attention-logit halves ----
    wh2, f12 = pl.pallas_call(
        _proj_kernel,
        out_shape=(jax.ShapeDtypeStruct((B * N_pad, F_out_pad), jnp.bfloat16),
                   jax.ShapeDtypeStruct((B * N_pad, 2), jnp.float32)),
        grid_spec=pltpu.PrefetchScalarGridSpec(
            num_scalar_prefetch=0,
            grid=(B * N_pad // T,),
            in_specs=[
                pl.BlockSpec((T, F_in), lambda r: (r, 0)),
                pl.BlockSpec((F_in, F_out_pad), lambda r: (0, 0)),
                pl.BlockSpec((F_out_pad, 2), lambda r: (0, 0)),
            ],
            out_specs=[
                pl.BlockSpec((T, F_out_pad), lambda r: (r, 0)),
                pl.BlockSpec((T, 2), lambda r: (r, 0)),
            ]),
        compiler_params=pltpu.CompilerParams(
            dimension_semantics=("parallel",),
            vmem_limit_bytes=vmem_limit),
    )(h2, W_p, a12)

    wh = wh2.reshape(B, N_pad, F_out_pad)          # bf16, reused by kernel 2
    f12 = f12.reshape(B, N_pad, 2)
    f1 = f12[:, :, 0:1]                            # (B, N_pad, 1)
    f2t = f12[:, :, 1].reshape(B, 1, N_pad)        # (B, 1, N_pad)

    attn_kernel = _make_attn_kernel(N, N_pad, T, ALPHA, MASK_VAL, CONCAT)

    # ---- kernel 2: tiled masked attention + aggregation ----
    out = pl.pallas_call(
        attn_kernel,
        out_shape=jax.ShapeDtypeStruct((B, N_pad, F_out_pad), jnp.float32),
        grid_spec=pltpu.PrefetchScalarGridSpec(
            num_scalar_prefetch=0,
            grid=(B, n_t, n_t),
            in_specs=[
                pl.BlockSpec((1, T, 1), lambda b, qi, ki: (b, qi, 0)),
                pl.BlockSpec((1, 1, T), lambda b, qi, ki: (b, 0, ki)),
                pl.BlockSpec((1, T, T), lambda b, qi, ki: (b, qi, ki)),
                pl.BlockSpec((1, T, F_out_pad), lambda b, qi, ki: (b, ki, 0)),
            ],
            out_specs=pl.BlockSpec((1, T, F_out_pad),
                                   lambda b, qi, ki: (b, qi, 0)),
            scratch_shapes=[
                pltpu.VMEM((T, 1), jnp.float32),            # running max
                pltpu.VMEM((T, 1), jnp.float32),            # running sum
                pltpu.VMEM((T, F_out_pad), jnp.float32),    # accumulator
            ]),
        compiler_params=pltpu.CompilerParams(
            dimension_semantics=("parallel", "parallel", "arbitrary"),
            vmem_limit_bytes=vmem_limit),
    )(f1, f2t, adj_i8, wh)

    return out[:, :N, :F_out]


# ------------------------------ reference -----------------------------------

def gat_layer_ref(h, adj, W, a):
    """Pure-JAX reference matching the PyTorch forward, for verification."""
    F_out = W.shape[1]
    Wh = jnp.einsum("bnf,fo->bno", h, W)
    f1 = Wh @ a[:F_out, 0]               # (B, N)
    f2 = Wh @ a[F_out:, 0]               # (B, N)
    e = f1[:, :, None] + f2[:, None, :]
    e = jnp.where(e > 0, e, ALPHA * e)
    att = jnp.where(adj > 0, e, MASK_VAL)
    att = jax.nn.softmax(att, axis=2)
    hp = jnp.einsum("bij,bjo->bio", att, Wh)
    return jnp.where(hp > 0, hp, jnp.exp(hp) - 1.0) if CONCAT else hp


def xavier_uniform(key, shape, gain):
    fan_in, fan_out = shape
    limit = gain * jnp.sqrt(6.0 / (fan_in + fan_out))
    return jax.random.uniform(key, shape, jnp.float32, -limit, limit)


if __name__ == "__main__":
    B, N, F_in, F_out = 2, 8, 16, 32

    key = jax.random.PRNGKey(0)
    k_h, k_adj, k_w, k_a = jax.random.split(key, 4)

    # Deterministic parameter init (xavier_uniform, gain=1.414 as in __init__)
    W = xavier_uniform(k_w, (F_in, F_out), gain=1.414)
    a = xavier_uniform(k_a, (2 * F_out, 1), gain=1.414)

    # Inputs
    h = jax.random.normal(k_h, (B, N, F_in), jnp.float32)
    adj = (jax.random.uniform(k_adj, (B, N, N)) > 0.5).astype(jnp.float32)
    adj = jnp.maximum(adj, jnp.eye(N, dtype=jnp.float32)[None])   # self-loops

    out = jax.block_until_ready(gat_layer(h, adj, W, a))
    ref = gat_layer_ref(h, adj, W, a)

    assert out.shape == (B, N, F_out)
    # bf16 MXU operands (f32 accumulation) + EUP approx reciprocal trade a few
    # thousandths of relative accuracy for large MXU/HBM wins -> looser check.
    assert jnp.allclose(out, ref, atol=5e-2, rtol=5e-2), \
        float(jnp.max(jnp.abs(out - ref)))

    print("KERNEL_OK")
</pallas_src>

<mosaic_0001>
module attributes {stable_mosaic.version = 11 : i64} {
  func.func @_proj_kernel(%arg0: i32, %arg1: memref<8x16xbf16, #tpu.memory_space<vmem>>, %arg2: memref<16x128xbf16, #tpu.memory_space<vmem>>, %arg3: memref<128x2xf32, #tpu.memory_space<vmem>>, %arg4: memref<8x128xbf16, #tpu.memory_space<vmem>>, %arg5: memref<8x2xf32, #tpu.memory_space<vmem>>) attributes {dimension_semantics = [#tpu.dimension_semantics<parallel>], iteration_bounds = array<i64: 2>, scalar_prefetch = 0 : i64, scratch_operands = 0 : i64, tpu.core_type = #tpu.core_type<tc>, window_params = [{transform_indices = @transform_0, window_bounds = array<i64: 8, 16>}, {pipeline_mode = #tpu.pipeline_mode<synchronous>, transform_indices = @transform_1, window_bounds = array<i64: 16, 128>}, {pipeline_mode = #tpu.pipeline_mode<synchronous>, transform_indices = @transform_2, window_bounds = array<i64: 128, 2>}, {transform_indices = @transform_3, window_bounds = array<i64: 8, 128>}, {transform_indices = @transform_4, window_bounds = array<i64: 8, 2>}]} {
    %c0 = arith.constant 0 : index
    %c0_0 = arith.constant 0 : index
    %0 = vector.load %arg1[%c0, %c0_0] : memref<8x16xbf16, #tpu.memory_space<vmem>>, vector<8x16xbf16>
    %c0_1 = arith.constant 0 : index
    %c0_2 = arith.constant 0 : index
    %1 = vector.load %arg2[%c0_1, %c0_2] : memref<16x128xbf16, #tpu.memory_space<vmem>>, vector<16x128xbf16>
    %cst = arith.constant dense<0.000000e+00> : vector<8x128xf32>
    %2 = tpu.matmul %0, %1, %cst {dimension_numbers = #tpu.dot_dimension_numbers<[1], [0], [0], [1], [0, 0, 1, 1], [], []>} : vector<8x16xbf16>, vector<16x128xbf16>, vector<8x128xf32> -> vector<8x128xf32>
    %c0_3 = arith.constant 0 : index
    %c0_4 = arith.constant 0 : index
    %3 = vector.load %arg3[%c0_3, %c0_4] : memref<128x2xf32, #tpu.memory_space<vmem>>, vector<128x2xf32>
    %cst_5 = arith.constant dense<0.000000e+00> : vector<8x2xf32>
    %4 = tpu.matmul %2, %3, %cst_5 {dimension_numbers = #tpu.dot_dimension_numbers<[1], [0], [0], [1], [0, 0, 1, 1], [], []>} : vector<8x128xf32>, vector<128x2xf32>, vector<8x2xf32> -> vector<8x2xf32>
    %c0_6 = arith.constant 0 : index
    %c0_7 = arith.constant 0 : index
    %5 = vector.load %arg5[%c0_6, %c0_7] : memref<8x2xf32, #tpu.memory_space<vmem>>, vector<8x2xf32>
    tpu.vector_store %arg5[%c0_6, %c0_7], %4 {strides = array<i32>} : memref<8x2xf32, #tpu.memory_space<vmem>>, vector<8x2xf32>,
    %6 = arith.truncf %2 : vector<8x128xf32> to vector<8x128xbf16>
    %c0_8 = arith.constant 0 : index
    %c0_9 = arith.constant 0 : index
    %7 = vector.load %arg4[%c0_8, %c0_9] : memref<8x128xbf16, #tpu.memory_space<vmem>>, vector<8x128xbf16>
    tpu.vector_store %arg4[%c0_8, %c0_9], %6 {strides = array<i32>} : memref<8x128xbf16, #tpu.memory_space<vmem>>, vector<8x128xbf16>,
    return
  }
  func.func @transform_0(%arg0: i32) -> (i32, i32) {
    %c0_i32 = arith.constant 0 : i32
    %c0_i32_0 = arith.constant 0 : i32
    return %arg0, %c0_i32 : i32, i32
  }
  func.func @transform_1(%arg0: i32) -> (i32, i32) {
    %c0_i32 = arith.constant 0 : i32
    %c0_i32_0 = arith.constant 0 : i32
    %c0_i32_1 = arith.constant 0 : i32
    return %c0_i32, %c0_i32_0 : i32, i32
  }
  func.func @transform_2(%arg0: i32) -> (i32, i32) {
    %c0_i32 = arith.constant 0 : i32
    %c0_i32_0 = arith.constant 0 : i32
    %c0_i32_1 = arith.constant 0 : i32
    return %c0_i32, %c0_i32_0 : i32, i32
  }
  func.func @transform_3(%arg0: i32) -> (i32, i32) {
    %c0_i32 = arith.constant 0 : i32
    %c0_i32_0 = arith.constant 0 : i32
    return %arg0, %c0_i32 : i32, i32
  }
  func.func @transform_4(%arg0: i32) -> (i32, i32) {
    %c0_i32 = arith.constant 0 : i32
    %c0_i32_0 = arith.constant 0 : i32
    return %arg0, %c0_i32 : i32, i32
  }
}

</mosaic_0001>

<llo_original>
// kernel: tpu_custom_call.1
$region0: #{tpu_custom_call.1}
  #allocation0 [shape = 'u32[]', space=smem, size = 0x4, offset = 0x4, fixed_abs, tag = 'smem constant byte address 0x4 - core index']
  #allocation1 [shape = 'u32[144,128]{1,0:T(1,128)}', space=vmem, size = 0x12000, scoped, tag = 'internal scratch']
  %s0 = inlined_call_operand.vmem [shape: bf16[16,16], index: 0, kind: input, shape index: {}]
  %s1 = inlined_call_operand.vmem [shape: bf16[16,128], index: 1, kind: input, shape index: {}]
  %s2 = inlined_call_operand.vmem [shape: f32[128,2], index: 2, kind: input, shape index: {}]
  %s3 = inlined_call_operand.hbm [shape: bf16[16,128], index: 3, kind: output, shape index: {0}]
  %s4 = inlined_call_operand.vmem [shape: f32[16,2], index: 4, kind: output, shape index: {1}]
  %5 = xla_tuple %s3, %s4
  %s6 = sld [smem:[#allocation0]]
  $region53: #{tpu_custom_call.1} parent=0
    _
  %s8 = ssub.s32 1, %s6
  %s9 = scalar_select 0, %s8, %s6
  $region1: #{tpu_custom_call.1} parent=0
    #allocation2 [shape = 'u8[4096]{0}', space=vmem, size = 0x1000, scoped, tag = 'output window, operand 0']
    #allocation3 [shape = 's32[2]{0}', space=sflag, size = 0x8, scoped, tag = 'scoped memory for tpu_custom_call.1']
    %10 = vsyncpa [#allocation3], 0
    %s11 = scalar_lea.sflag [#allocation3], 1
    %12 = vsyncpa %s11, 0
    loop: start=0, step=1, limit=4
    $region2: #{tpu_custom_call.1} parent=1 // loop_pre_header
      _
    $region3: #{tpu_custom_call.1} parent=1 // loop_header
      %s14 = sphi 0, %s18
      %p15 = scmp.ge.s32.totalorder %s14, 4
      %s24 = sphi 0, %s26
      %s27 = sphi 0, %s24
      %s28 = sphi 0, %s27
      %s44 = sphi 0, %s28
      %s48 = sphi 0, %s48
      %s50 = sphi 0, %s48
      %s51 = sphi 0, %s50
      %s65 = sphi 0, %s51
      %s69 = sphi 0, %s69
      %s71 = sphi 0, %s69
      %s72 = sphi 0, %s71
      %s86 = sphi 0, %s72
      %s92 = sphi 0, %s94
      %s95 = sphi 0, %s92
      %s96 = sphi 0, %s95
      %s112 = sphi 0, %s96
      %s118 = sphi 0, %s120
      %s121 = sphi 0, %s118
      %s122 = sphi 0, %s121
      %s138 = sphi 0, %s122
    $region4: #{tpu_custom_call.1} parent=1 // loop_header_branch
      %17 = sbr.rel (%p15) target = $region8
    $region5: #{tpu_custom_call.1} parent=1 // loop_body
      %s19 = ssub.s32 %s14, 1
      %s20 = ssub.s32 %s14, 2
      %s21 = sadd.s32 %s14, 1
      %s22 = ssub.s32 %s14, %s21
      %p23 = scmp.eq.s32.totalorder %s22, 0
      %s25 = sadd.s32 %s24, 1
      %s26 = scalar_select %p23, %s24, %s25
      %p29 = pneg %p23
      %p30 = scmp.eq.s32.totalorder %s14, 1
      %p31 = por %p29, %p30
      %p32 = scmp.ne.s32.totalorder %s24, %s27
      %p33 = scmp.eq.s32.totalorder %s14, 0
      %p34 = por %p32, %p33
      %p35 = scmp.ne.s32.totalorder %s24, %s27
      %p36 = scmp.eq.s32.totalorder %s19, 1
      %p37 = por %p35, %p36
      %p38 = scmp.ne.s32.totalorder %s27, %s28
      %p39 = scmp.eq.s32.totalorder %s19, 0
      %p40 = por %p38, %p39
      %p41 = scmp.ne.s32.totalorder %s27, %s28
      %p42 = scmp.eq.s32.totalorder %s20, 1
      %p43 = por %p41, %p42
      %p45 = scmp.ne.s32.totalorder %s28, %s44
      %p46 = scmp.eq.s32.totalorder %s20, 0
      %p47 = por %p45, %p46
      %s49 = sadd.s32 %s48, 1
      %p52 = scmp.eq.s32.totalorder %s14, 1
      %p53 = scmp.ne.s32.totalorder %s48, %s50
      %p54 = scmp.eq.s32.totalorder %s14, 0
      %p55 = por %p53, %p54
      %p56 = scmp.ne.s32.totalorder %s48, %s50
      %p57 = scmp.eq.s32.totalorder %s19, 1
      %p58 = por %p56, %p57
      %p59 = scmp.ne.s32.totalorder %s50, %s51
      %p60 = scmp.eq.s32.totalorder %s19, 0
      %p61 = por %p59, %p60
      %p62 = scmp.ne.s32.totalorder %s50, %s51
      %p63 = scmp.eq.s32.totalorder %s20, 1
      %p64 = por %p62, %p63
      %p66 = scmp.ne.s32.totalorder %s51, %s65
      %p67 = scmp.eq.s32.totalorder %s20, 0
      %p68 = por %p66, %p67
      %s70 = sadd.s32 %s69, 1
      %p73 = scmp.eq.s32.totalorder %s14, 1
      %p74 = scmp.ne.s32.totalorder %s69, %s71
      %p75 = scmp.eq.s32.totalorder %s14, 0
      %p76 = por %p74, %p75
      %p77 = scmp.ne.s32.totalorder %s69, %s71
      %p78 = scmp.eq.s32.totalorder %s19, 1
      %p79 = por %p77, %p78
      %p80 = scmp.ne.s32.totalorder %s71, %s72
      %p81 = scmp.eq.s32.totalorder %s19, 0
      %p82 = por %p80, %p81
      %p83 = scmp.ne.s32.totalorder %s71, %s72
      %p84 = scmp.eq.s32.totalorder %s20, 1
      %p85 = por %p83, %p84
      %p87 = scmp.ne.s32.totalorder %s72, %s86
      %p88 = scmp.eq.s32.totalorder %s20, 0
      %p89 = por %p87, %p88
      %s90 = ssub.s32 %s14, %s21
      %p91 = scmp.eq.s32.totalorder %s90, 0
      %s93 = sadd.s32 %s92, 1
      %s94 = scalar_select %p91, %s92, %s93
      %p97 = pneg %p91
      %p98 = scmp.eq.s32.totalorder %s14, 1
      %p99 = por %p97, %p98
      %p100 = scmp.ne.s32.totalorder %s92, %s95
      %p101 = scmp.eq.s32.totalorder %s14, 0
      %p102 = por %p100, %p101
      %p103 = scmp.ne.s32.totalorder %s92, %s95
      %p104 = scmp.eq.s32.totalorder %s19, 1
      %p105 = por %p103, %p104
      %p106 = scmp.ne.s32.totalorder %s95, %s96
      %p107 = scmp.eq.s32.totalorder %s19, 0
      %p108 = por %p106, %p107
      %p109 = scmp.ne.s32.totalorder %s95, %s96
      %p110 = scmp.eq.s32.totalorder %s20, 1
      %p111 = por %p109, %p110
      %p113 = scmp.ne.s32.totalorder %s96, %s112
      %p114 = scmp.eq.s32.totalorder %s20, 0
      %p115 = por %p113, %p114
      %s116 = ssub.s32 %s14, %s21
      %p117 = scmp.eq.s32.totalorder %s116, 0
      %s119 = sadd.s32 %s118, 1
      %s120 = scalar_select %p117, %s118, %s119
      %p123 = pneg %p117
      %p124 = scmp.eq.s32.totalorder %s14, 1
      %p125 = por %p123, %p124
      %p126 = scmp.ne.s32.totalorder %s118, %s121
      %p127 = scmp.eq.s32.totalorder %s14, 0
      %p128 = por %p126, %p127
      %p129 = scmp.ne.s32.totalorder %s118, %s121
      %p130 = scmp.eq.s32.totalorder %s19, 1
      %p131 = por %p129, %p130
      %p132 = scmp.ne.s32.totalorder %s121, %s122
      %p133 = scmp.eq.s32.totalorder %s19, 0
      %p134 = por %p132, %p133
      %p135 = scmp.ne.s32.totalorder %s121, %s122
      %p136 = scmp.eq.s32.totalorder %s20, 1
      %p137 = por %p135, %p136
      %p139 = scmp.ne.s32.totalorder %s122, %s138
      %p140 = scmp.eq.s32.totalorder %s20, 0
      %p141 = por %p139, %p140
      %p142 = scmp.le.s32.totalorder 1, %s14
      %p143 = scmp.lt.s32.totalorder %s14, 3
      %p144 = pnand %p142, %p143
      %p145 = pneg %p144
      // Predicated region
      $region9: #{tpu_custom_call.1} parent=5 // pred_check
        _
      $region10: #{tpu_custom_call.1} parent=5 // pred_check_branch
        %147 = sbr.rel (%p144) target = $region12
      $region11: #{tpu_custom_call.1} parent=5 // pred_region
        %s148 = ssub.s32 %s14, 1
        // Predicated region
        $region13: #{tpu_custom_call.1} parent=11 // pred_check
          %p149 = pneg %p61
        $region14: #{tpu_custom_call.1} parent=11 // pred_check_branch
          %151 = sbr.rel (%p149) target = $region16
        $region15: #{tpu_custom_call.1} parent=11 // pred_region
          _
        $region16: #{tpu_custom_call.1} parent=11 // pred_fallthru
          _
        // Predicated region
        $region17: #{tpu_custom_call.1} parent=11 // pred_check
          %p152 = pneg %p82
        $region18: #{tpu_custom_call.1} parent=11 // pred_check_branch
          %154 = sbr.rel (%p152) target = $region20
        $region19: #{tpu_custom_call.1} parent=11 // pred_region
          _
        $region20: #{tpu_custom_call.1} parent=11 // pred_fallthru
          _
      $region12: #{tpu_custom_call.1} parent=5 // pred_fallthru
        _
      %p155 = scmp.lt.s32.totalorder %s14, 2
      // Predicated region
      $region21: #{tpu_custom_call.1} parent=5 // pred_check
        %p156 = pneg %p155
      $region22: #{tpu_custom_call.1} parent=5 // pred_check_branch
        %158 = sbr.rel (%p156) target = $region24
      $region23: #{tpu_custom_call.1} parent=5 // pred_region
        // Predicated region
        $region25: #{tpu_custom_call.1} parent=23 // pred_check
          %p159 = pneg %p34
        $region26: #{tpu_custom_call.1} parent=23 // pred_check_branch
          %161 = sbr.rel (%p159) target = $region28
        $region27: #{tpu_custom_call.1} parent=23 // pred_region
          %p162 = scmp.lt.s32.totalorder %s14, 1
          %s163 = scalar_select %p162, %s14, 1
          %s164 = smul.addr %s163, 4
          %s165 = scalar_lea.vmem %s0, %s164
        $region28: #{tpu_custom_call.1} parent=23 // pred_fallthru
          _
      $region24: #{tpu_custom_call.1} parent=5 // pred_fallthru
        _
      %p166 = scmp.le.s32.totalorder 1, %s14
      %p167 = scmp.lt.s32.totalorder %s14, 3
      %p168 = pnand %p166, %p167
      %p169 = pneg %p168
      // Predicated region
      $region29: #{tpu_custom_call.1} parent=5 // pred_check
        _
      $region30: #{tpu_custom_call.1} parent=5 // pred_check_branch
        %171 = sbr.rel (%p168) target = $region32
      $region31: #{tpu_custom_call.1} parent=5 // pred_region
        %s172 = ssub.s32 %s14, 1
        %p173 = scmp.lt.s32.totalorder %s19, 1
        %s174 = scalar_select %p173, %s19, 1
        %s175 = smul.addr %s174, 4
        %s176 = scalar_lea.vmem %s0, %s175
        %p177 = pneg %p40
        %p178 = pneg %p37
        %p179 = pneg %p61
        %p180 = pneg %p58
        %p181 = pneg %p82
        %p182 = pneg %p79
        %p183 = pneg %p108
        %p184 = pneg %p105
        %s185 = sand.u32 %s95, 1
        %s186 = scalar_lea.sflag [#allocation3], %s185
        %s187 = sand.u32 %s95, 1
        %s188 = smul.addr %s187, 4
        %s189 = scalar_lea.vmem [#allocation2], %s188
        %p190 = pneg %p134
        %p191 = pneg %p131
        %p192 = scmp.lt.s32.totalorder %s19, 1
        %s193 = scalar_select %p192, %s19, 1
        %s194 = smul.addr %s193, 8
        %s195 = scalar_lea.vmem %s4, %s194
        %p196 = scmp.lt.s32.totalorder %s19, 1
        %s197 = scalar_select %p196, %s19, 1
        %s198 = smul.addr %s197, 4
        %s199 = scalar_lea.vmem %s0, %s198
        %p200 = scmp.lt.s32.totalorder %s19, 1
        %s201 = scalar_select %p200, %s19, 1
        %s202 = smul.addr %s201, 8
        %s203 = scalar_lea.vmem %s4, %s202
        %v205 = vld [vmem:[%s199] sm:$0xf]
        %v206 = vld [vmem:[%s1] sm:$0xf]
        %v207 = vld [vmem:[%s1 + $0x4] sm:$0xf]
        %v210 = vunpack.c.l.b16 %v206
        %v211 = vunpack.c.l.b16 %v207
        %v212 = vpack.c.b16 %v211, %v210
        %vm214 = vcmask 130048
        %v216 = vsel %vm214, %v205, 0
        %218 = vmatprep.subr.bf16.mxu0 0
        %219 = vmatpush1.bf16.msra.mxu0 0
        %220 = vmatprep.subr.bf16.mxu0 0
        %221 = vmatpush1.bf16.msra.mxu0 0
        %222 = vmatprep.subr.bf16.mxu0 0
        %223 = vmatpush1.bf16.msra.mxu0 0
        %224 = vmatprep.subr.bf16.mxu0 0
        %225 = vmatpush1.bf16.msra.mxu0 0
        %226 = vmatprep.subr.bf16.mxu0 0
        %227 = vmatpush1.bf16.msra.mxu0 0
        %228 = vmatprep.subr.bf16.mxu0 0
        %229 = vmatpush1.bf16.msra.mxu0 0
        %230 = vmatprep.subr.bf16.mxu0 0
        %231 = vmatpush1.bf16.msra.mxu0 0
        %232 = vmatprep.subr.bf16.mxu0 0
        %233 = vmatpush1.bf16.msra.mxu0 %v212
        %234 = vmatprep.subr.bf16.mxu0 0
        %235 = vmatpush2.bf16.msra.mxu0 0
        %236 = vmatprep.subr.bf16.mxu0 0
        %237 = vmatpush2.bf16.msra.mxu0 0
        %238 = vmatprep.subr.bf16.mxu0 0
        %239 = vmatpush2.bf16.msra.mxu0 0
        %240 = vmatprep.subr.bf16.mxu0 0
        %241 = vmatpush2.bf16.msra.mxu0 0
        %242 = vmatprep.subr.bf16.mxu0 0
        %243 = vmatpush2.bf16.msra.mxu0 0
        %244 = vmatprep.subr.bf16.mxu0 0
        %245 = vmatpush2.bf16.msra.mxu0 0
        %246 = vmatprep.subr.bf16.mxu0 0
        %247 = vmatpush2.bf16.msra.mxu0 0
        %248 = vmatprep.subr.bf16.mxu0 0
        %249 = vmatpush2.bf16.msra.mxu0 0
        %250 = vmatprep.mubr.bf16.mxu0 0
        %251 = vmatmul.mubr.bf16.gmra.mxu0 %v216
        %v252 = vpop.f32.mrf.mxu0
        %v253 = vadd.f32 0.0, %v252
        %v254 = vpop.f32.mrf.mxu0
        %v255 = vpop.f32.mrf.mxu0
        %v256 = vpop.f32.mrf.mxu0
        %257 = vdwg.mxu0
        %v258 = vld [vmem:[%s2] sm:$0xff]
        %v259 = vld [vmem:[%s2 + $0x8] sm:$0xff]
        %v260 = vld [vmem:[%s2 + $0x10] sm:$0xff]
        %v261 = vld [vmem:[%s2 + $0x18] sm:$0xff]
        %v262 = vld [vmem:[%s2 + $0x20] sm:$0xff]
        %v263 = vld [vmem:[%s2 + $0x28] sm:$0xff]
        %v264 = vld [vmem:[%s2 + $0x30] sm:$0xff]
        %v265 = vld [vmem:[%s2 + $0x38] sm:$0xff]
        %v266 = vld [vmem:[%s2 + $0x40] sm:$0xff]
        %v267 = vld [vmem:[%s2 + $0x48] sm:$0xff]
        %v268 = vld [vmem:[%s2 + $0x50] sm:$0xff]
        %v269 = vld [vmem:[%s2 + $0x58] sm:$0xff]
        %v270 = vld [vmem:[%s2 + $0x60] sm:$0xff]
        %v271 = vld [vmem:[%s2 + $0x68] sm:$0xff]
        %v272 = vld [vmem:[%s2 + $0x70] sm:$0xff]
        %v273 = vld [vmem:[%s2 + $0x78] sm:$0xff]
        %274 = vmatprep.subr.mxu0 0.0
        %275 = vmatpush1.msra.mxu0 %v273
        %276 = vmatprep.subr.mxu0 0.0
        %277 = vmatpush1.msra.mxu0 %v272
        %278 = vmatprep.subr.mxu0 0.0
        %279 = vmatpush1.msra.mxu0 %v271
        %280 = vmatprep.subr.mxu0 0.0
        %281 = vmatpush1.msra.mxu0 %v270
        %282 = vmatprep.subr.mxu0 0.0
        %283 = vmatpush1.msra.mxu0 %v269
        %284 = vmatprep.subr.mxu0 0.0
        %285 = vmatpush1.msra.mxu0 %v268
        %286 = vmatprep.subr.mxu0 0.0
        %287 = vmatpush1.msra.mxu0 %v267
        %288 = vmatprep.subr.mxu0 0.0
        %289 = vmatpush1.msra.mxu0 %v266
        %290 = vmatprep.subr.mxu0 0.0
        %291 = vmatpush1.msra.mxu0 %v265
        %292 = vmatprep.subr.mxu0 0.0
        %293 = vmatpush1.msra.mxu0 %v264
        %294 = vmatprep.subr.mxu0 0.0
        %295 = vmatpush1.msra.mxu0 %v263
        %296 = vmatprep.subr.mxu0 0.0
        %297 = vmatpush1.msra.mxu0 %v262
        %298 = vmatprep.subr.mxu0 0.0
        %299 = vmatpush1.msra.mxu0 %v261
        %300 = vmatprep.subr.mxu0 0.0
        %301 = vmatpush1.msra.mxu0 %v260
        %302 = vmatprep.subr.mxu0 0.0
        %303 = vmatpush1.msra.mxu0 %v259
        %304 = vmatprep.subr.mxu0 0.0
        %305 = vmatpush1.msra.mxu0 %v258
        %306 = vmatprep.subr.mxu0 0.0
        %307 = vmatpush2.msra.mxu0 0.0
        %308 = vmatprep.subr.mxu0 0.0
        %309 = vmatpush2.msra.mxu0 0.0
        %310 = vmatprep.subr.mxu0 0.0
        %311 = vmatpush2.msra.mxu0 0.0
        %312 = vmatprep.subr.mxu0 0.0
        %313 = vmatpush2.msra.mxu0 0.0
        %314 = vmatprep.subr.mxu0 0.0
        %315 = vmatpush2.msra.mxu0 0.0
        %316 = vmatprep.subr.mxu0 0.0
        %317 = vmatpush2.msra.mxu0 0.0
        %318 = vmatprep.subr.mxu0 0.0
        %319 = vmatpush2.msra.mxu0 0.0
        %320 = vmatprep.subr.mxu0 0.0
        %321 = vmatpush2.msra.mxu0 0.0
        %322 = vmatprep.subr.mxu0 0.0
        %323 = vmatpush2.msra.mxu0 0.0
        %324 = vmatprep.subr.mxu0 0.0
        %325 = vmatpush2.msra.mxu0 0.0
        %326 = vmatprep.subr.mxu0 0.0
        %327 = vmatpush2.msra.mxu0 0.0
        %328 = vmatprep.subr.mxu0 0.0
        %329 = vmatpush2.msra.mxu0 0.0
        %330 = vmatprep.subr.mxu0 0.0
        %331 = vmatpush2.msra.mxu0 0.0
        %332 = vmatprep.subr.mxu0 0.0
        %333 = vmatpush2.msra.mxu0 0.0
        %334 = vmatprep.subr.mxu0 0.0
        %335 = vmatpush2.msra.mxu0 0.0
        %336 = vmatprep.subr.mxu0 0.0
        %337 = vmatpush2.msra.mxu0 0.0
        %338 = vmatprep.mubr.f32.mxu0 0.0
        %339 = vmatmul.mubr.f32.gmra.mxu0 %v253
        %v340 = vpop.f32.mrf.mxu0
        %v341 = vadd.f32 0.0, %v340
        %v342 = vpop.f32.mrf.mxu0
        %343 = vdwg.mxu0
        %vm344 = vcmask 15360
        %345 = vst.msk [vmem:[%s203] sm:$0xff] %vm344, %v341
        %v346 = vpack.c.bf16 %v253, %v253
        %347 = vst [vmem:[%s189] sm:$0xf] %v346
        %s348 = sand.u32 %s95, 1
        %s349 = scalar_lea.sflag [#allocation3], %s348
        %s350 = sand.u32 %s95, 1
        %s351 = smul.addr %s350, 4
        %s352 = scalar_lea.vmem [#allocation2], %s351
        %p353 = scmp.lt.s32.totalorder %s19, 1
        %s354 = scalar_select %p353, %s19, 1
        %s355 = smul.addr %s354, 8
        %s356 = scalar_lea.vmem %s4, %s355
        // Predicated region
        $region33: #{tpu_custom_call.1} parent=31 // pred_check
          %p357 = pneg %p105
        $region34: #{tpu_custom_call.1} parent=31 // pred_check_branch
          %359 = sbr.rel (%p357) target = $region36
        $region35: #{tpu_custom_call.1} parent=31 // pred_region
          %s361 = ssub.s32 64, 64
          %362 = vsyncadd %s349, %s361
          %s363 = smul.addr %s19, 64
          %s364 = scalar_lea.hbm %s3, %s363
          %s366 = sshll.u32 %s352, 4
          %s367 = int_to_ptr.vmem [resolvable:$true] %s366
          %369 = dma.vmem_to_hbm [thread:$0]  %s367, 64, %s364, %s349
        $region36: #{tpu_custom_call.1} parent=31 // pred_fallthru
          _
        // Predicated region
        $region37: #{tpu_custom_call.1} parent=31 // pred_check
          %p370 = pneg %p131
        $region38: #{tpu_custom_call.1} parent=31 // pred_check_branch
          %372 = sbr.rel (%p370) target = $region40
        $region39: #{tpu_custom_call.1} parent=31 // pred_region
          _
        $region40: #{tpu_custom_call.1} parent=31 // pred_fallthru
          _
      $region32: #{tpu_custom_call.1} parent=5 // pred_fallthru
        _
      %p373 = scmp.le.s32.totalorder 2, %s14
      // Predicated region
      $region41: #{tpu_custom_call.1} parent=5 // pred_check
        %p374 = pneg %p373
      $region42: #{tpu_custom_call.1} parent=5 // pred_check_branch
        %376 = sbr.rel (%p374) target = $region44
      $region43: #{tpu_custom_call.1} parent=5 // pred_region
        %s377 = ssub.s32 %s14, 2
        // Predicated region
        $region45: #{tpu_custom_call.1} parent=43 // pred_check
          %p378 = pneg %p111
        $region46: #{tpu_custom_call.1} parent=43 // pred_check_branch
          %380 = sbr.rel (%p378) target = $region48
        $region47: #{tpu_custom_call.1} parent=43 // pred_region
          %s381 = sand.u32 %s96, 1
          %s382 = scalar_lea.sflag [#allocation3], %s381
          %s383 = sand.u32 %s96, 1
          %s384 = smul.addr %s383, 4
          %s385 = scalar_lea.vmem [#allocation2], %s384
          %386 = dma.done %s382, 64
        $region48: #{tpu_custom_call.1} parent=43 // pred_fallthru
          _
        // Predicated region
        $region49: #{tpu_custom_call.1} parent=43 // pred_check
          %p387 = pneg %p137
        $region50: #{tpu_custom_call.1} parent=43 // pred_check_branch
          %389 = sbr.rel (%p387) target = $region52
        $region51: #{tpu_custom_call.1} parent=43 // pred_region
          %p390 = scmp.lt.s32.totalorder %s20, 1
          %s391 = scalar_select %p390, %s20, 1
          %s392 = smul.addr %s391, 8
          %s393 = scalar_lea.vmem %s4, %s392
        $region52: #{tpu_custom_call.1} parent=43 // pred_fallthru
          _
      $region44: #{tpu_custom_call.1} parent=5 // pred_fallthru
        _
    $region6: #{tpu_custom_call.1} parent=1 // loop_footer
      %s18 = sadd.s32 1, %s14
    $region7: #{tpu_custom_call.1} parent=1 // loop_footer_branch
      %13 = sbr.rel target = $region3
    $region8: #{tpu_custom_call.1} parent=1 // loop_exit
      _
    %394 = vsyncpa [#allocation3], 1
    %s395 = scalar_lea.sflag [#allocation3], 1
    %396 = vsyncpa %s395, 1

</llo_original>
